<compile_context>
chip_gen: v7x
topology: tpu7x:2x2x1
jax: 0.10.0
libtpu: 0.0.40
codegen_flags: <defaults>
</compile_context>

<pallas_src>
import functools

import jax
import jax.numpy as jnp
import numpy as np
from jax.experimental import pallas as pl
from jax.experimental.pallas import tpu as pltpu


def _choose_pack(h, w):
    """Image rows per slab row k (k | h) so the packed row length k*w is lane-dense."""
    if w % 128 == 0:
        return 1
    divisors = [d for d in range(1, h + 1) if h % d == 0]
    for d in divisors:                     # smallest exact multiple of 128 lanes
        if (d * w) % 128 == 0 and d * w <= 2048:
            return d
    best_d, best_waste = 1, None           # fall back: best lane density
    for d in divisors:
        kw = d * w
        if kw > 1024:
            break
        padded = ((kw + 127) // 128) * 128
        waste = (padded - kw) / padded
        if best_waste is None or waste < best_waste - 1e-12:
            best_d, best_waste = d, waste
    return best_d


def _gradient_loss_kernel(mx_ref, laney_ref, rowy_ref, p_ref, t_ref, out_ref, *,
                          k, width, tile_rows, acc_rows, kw):
    i = pl.program_id(1)

    @pl.when(i == 0)
    def _init():
        out_ref[...] = jnp.zeros_like(out_ref)

    p = p_ref[...]
    t = t_ref[...]
    if p.dtype not in (jnp.float32, jnp.bfloat16):
        p = p.astype(jnp.float32)
        t = t.astype(jnp.float32)

    # x-gradient: neighbour is one lane to the left (previous image column).
    p_sx = pltpu.roll(p, 1, axis=1)
    t_sx = pltpu.roll(t, 1, axis=1)
    diff_x = jnp.abs(jnp.abs(p - p_sx) - jnp.abs(t - t_sx))

    # y-gradient: neighbour is the previous image row = W lanes to the left,
    # except for the first image row of each slab-row group, whose neighbour is
    # the last image row of the previous slab row (sublane roll).
    if k > 1:
        p_l = pltpu.roll(p, width, axis=1)
        t_l = pltpu.roll(t, width, axis=1)
        p_w = pltpu.roll(p_l, 1, axis=0)
        t_w = pltpu.roll(t_l, 1, axis=0)
        wrap = jnp.broadcast_to(laney_ref[...], p.shape) == 0.0
        p_sy = jnp.where(wrap, p_w, p_l)
        t_sy = jnp.where(wrap, t_w, t_l)
    else:
        p_sy = pltpu.roll(p, 1, axis=0)
        t_sy = pltpu.roll(t, 1, axis=0)
    diff_y = jnp.abs(jnp.abs(p - p_sy) - jnp.abs(t - t_sy))

    # Resident multiplicative masks (normalization 1/n_x, 1/n_y baked in):
    #   mx    (1, kw)         {0, 1/n_x}   zero on image-column-0 lanes
    #   rowy  (tile_rows, 1)  {0, 1/n_y}   zero on plane-start slab rows
    #   laney (1, kw)         {0, 1/n_y}   zero on first-image-row-of-group lanes
    my = jnp.maximum(rowy_ref[...], laney_ref[...])
    contrib = (diff_x.astype(jnp.float32) * mx_ref[...]
               + diff_y.astype(jnp.float32) * my)

    if acc_rows != tile_rows:
        contrib = contrib.reshape(tile_rows // acc_rows, acc_rows, kw).sum(axis=0)
    out_ref[...] = out_ref[...] + contrib


def gradient_loss(pred, target, weight=1.0, *, target_block_bytes=4 * 1024 * 1024):
    """Pallas TPU implementation of GradientLoss.forward (NCHW inputs)."""
    assert pred.shape == target.shape
    N, C, H, W = pred.shape
    nc = N * C
    itemsize = jnp.dtype(pred.dtype).itemsize

    # Lane packing (free, row-major reshape).
    k = _choose_pack(H, W)
    kw = k * W
    plane_rows = H // k
    total_rows = nc * plane_rows
    pred2 = pred.reshape(total_rows, kw)
    target2 = target.reshape(total_rows, kw)

    # Planes per block: a divisor of nc (no overhang / duplicate blocks, no
    # tail masking), sized against the per-input block byte target.
    plane_block_bytes = plane_rows * kw * itemsize
    target_b = max(1, int(target_block_bytes) // max(1, plane_block_bytes))
    divisors = [d for d in range(1, nc + 1) if nc % d == 0]
    fitting = [d for d in divisors if d <= target_b]
    b = max(fitting) if fitting else 1
    nb = nc // b
    tile_rows = b * plane_rows

    # Blocked sublane dim must be 8-aligned unless the block spans the array.
    if nb > 1 and tile_rows % 8 != 0:
        aligned = [d for d in divisors if (d * plane_rows) % 8 == 0]
        if aligned:
            under = [d for d in aligned if d <= target_b]
            b = max(under) if under else min(aligned)
        else:
            b = nc
        nb = nc // b
        tile_rows = b * plane_rows
    # TODO(synk): planes larger than the VMEM block budget would need H-tiling
    # with a one-row halo; for now every block holds >= 1 whole plane.

    # Split blocks across v7x's two TensorCores only when it is clean; on
    # single-TC v5e/v6e the 2-long parallel axis is just a sequential loop.
    p_parts = 2 if (nb >= 2 and nb % 2 == 0 and tile_rows % 8 == 0) else 1
    steps = nb // p_parts
    acc_rows = 8 if tile_rows % 8 == 0 else tile_rows

    # Normalization baked into the masks (guard degenerate W==1 / H==1).
    n_x = nc * H * (W - 1)
    n_y = nc * (H - 1) * W
    inv_nx = 0.0 if n_x == 0 else 1.0 / n_x
    inv_ny = 0.0 if n_y == 0 else 1.0 / n_y
    j = np.arange(kw)
    mx = jnp.asarray(np.where((j % W) != 0, inv_nx, 0.0)
                     .astype(np.float32).reshape(1, kw))
    laney = jnp.asarray(np.where(j >= W, inv_ny, 0.0)
                        .astype(np.float32).reshape(1, kw))
    r = np.arange(tile_rows)
    rowy = jnp.asarray(np.where((r % plane_rows) != 0, inv_ny, 0.0)
                       .astype(np.float32).reshape(tile_rows, 1))

    kernel = functools.partial(
        _gradient_loss_kernel, k=k, width=W, tile_rows=tile_rows,
        acc_rows=acc_rows, kw=kw)

    data_spec = pl.BlockSpec((tile_rows, kw), lambda c, i: (c * steps + i, 0))
    mx_spec = pl.BlockSpec((1, kw), lambda c, i: (0, 0))
    laney_spec = pl.BlockSpec((1, kw), lambda c, i: (0, 0))
    rowy_spec = pl.BlockSpec((tile_rows, 1), lambda c, i: (0, 0))
    out_spec = pl.BlockSpec((acc_rows, kw), lambda c, i: (c, 0))

    block_bytes = tile_rows * kw * itemsize
    vmem_limit = int(min(max(4 * block_bytes + (2 << 20), 16 << 20), 40 << 20))

    out = pl.pallas_call(
        kernel,
        out_shape=jax.ShapeDtypeStruct((p_parts * acc_rows, kw), jnp.float32),
        grid_spec=pltpu.PrefetchScalarGridSpec(
            num_scalar_prefetch=0,
            grid=(p_parts, steps),
            in_specs=[mx_spec, laney_spec, rowy_spec, data_spec, data_spec],
            out_specs=out_spec,
        ),
        compiler_params=pltpu.CompilerParams(
            dimension_semantics=("parallel", "arbitrary"),
            vmem_limit_bytes=vmem_limit,
        ),
    )(mx, laney, rowy, pred2, target2)

    return jnp.sum(out) * weight


def _reference(pred, target, weight=1.0):
    pred_dx = jnp.abs(pred[:, :, :, :-1] - pred[:, :, :, 1:])
    pred_dy = jnp.abs(pred[:, :, :-1, :] - pred[:, :, 1:, :])
    targ_dx = jnp.abs(target[:, :, :, :-1] - target[:, :, :, 1:])
    targ_dy = jnp.abs(target[:, :, :-1, :] - target[:, :, 1:, :])
    return (jnp.mean(jnp.abs(pred_dx - targ_dx))
            + jnp.mean(jnp.abs(pred_dy - targ_dy))) * weight


if __name__ == "__main__":
    key = jax.random.PRNGKey(0)
    k1, k2 = jax.random.split(key)
    N, C, H, W = 2, 4, 16, 16
    pred = jax.random.normal(k1, (N, C, H, W), dtype=jnp.float32)
    target = jax.random.normal(k2, (N, C, H, W), dtype=jnp.float32)

    weight = 1.0
    loss = jax.block_until_ready(gradient_loss(pred, target, weight))
    ref = jax.block_until_ready(_reference(pred, target, weight))

    assert jnp.allclose(loss, ref, rtol=1e-5, atol=1e-6), (loss, ref)
    print("KERNEL_OK")
</pallas_src>

<mosaic_0001>
module attributes {stable_mosaic.version = 11 : i64} {
  func.func @_gradient_loss_kernel(%arg0: i32, %arg1: i32, %arg2: memref<1x128xf32, #tpu.memory_space<vmem>>, %arg3: memref<1x128xf32, #tpu.memory_space<vmem>>, %arg4: memref<16x1xf32, #tpu.memory_space<vmem>>, %arg5: memref<16x128xf32, #tpu.memory_space<vmem>>, %arg6: memref<16x128xf32, #tpu.memory_space<vmem>>, %arg7: memref<8x128xf32, #tpu.memory_space<vmem>>) attributes {dimension_semantics = [#tpu.dimension_semantics<parallel>, #tpu.dimension_semantics<arbitrary>], iteration_bounds = array<i64: 1, 1>, scalar_prefetch = 0 : i64, scratch_operands = 0 : i64, tpu.core_type = #tpu.core_type<tc>, window_params = [{pipeline_mode = #tpu.pipeline_mode<synchronous>, transform_indices = @transform_0, window_bounds = array<i64: 1, 128>}, {pipeline_mode = #tpu.pipeline_mode<synchronous>, transform_indices = @transform_1, window_bounds = array<i64: 1, 128>}, {pipeline_mode = #tpu.pipeline_mode<synchronous>, transform_indices = @transform_2, window_bounds = array<i64: 16, 1>}, {transform_indices = @transform_3, window_bounds = array<i64: 16, 128>}, {transform_indices = @transform_4, window_bounds = array<i64: 16, 128>}, {transform_indices = @transform_5, window_bounds = array<i64: 8, 128>}]} {
    %c0_i32 = arith.constant 0 : i32
    %0 = arith.cmpi eq, %arg1, %c0_i32 : i32
    %1 = arith.extui %0 : i1 to i32
    %c0_i32_0 = arith.constant 0 : i32
    %2 = arith.cmpi ne, %1, %c0_i32_0 : i32
    scf.if %2 {
      %cst_21 = arith.constant 0.000000e+00 : f32
      %45 = vector.broadcast %cst_21 : f32 to vector<8x128xf32>
      %c0_22 = arith.constant 0 : index
      %c0_23 = arith.constant 0 : index
      %46 = vector.load %arg7[%c0_22, %c0_23] : memref<8x128xf32, #tpu.memory_space<vmem>>, vector<8x128xf32>
      tpu.vector_store %arg7[%c0_22, %c0_23], %45 {strides = array<i32>} : memref<8x128xf32, #tpu.memory_space<vmem>>, vector<8x128xf32>,
    } else {
    }
    %c0 = arith.constant 0 : index
    %c0_1 = arith.constant 0 : index
    %3 = vector.load %arg5[%c0, %c0_1] : memref<16x128xf32, #tpu.memory_space<vmem>>, vector<16x128xf32>
    %c0_2 = arith.constant 0 : index
    %c0_3 = arith.constant 0 : index
    %4 = vector.load %arg6[%c0_2, %c0_3] : memref<16x128xf32, #tpu.memory_space<vmem>>, vector<16x128xf32>
    %c1_i32 = arith.constant 1 : i32
    %5 = tpu.dynamic_rotate %3 by %c1_i32 dim 1 : vector<16x128xf32>, i32 -> vector<16x128xf32>
    %c1_i32_4 = arith.constant 1 : i32
    %6 = tpu.dynamic_rotate %4 by %c1_i32_4 dim 1 : vector<16x128xf32>, i32 -> vector<16x128xf32>
    %7 = arith.subf %3, %5 : vector<16x128xf32>
    %8 = math.absf %7 : vector<16x128xf32>
    %9 = arith.subf %4, %6 : vector<16x128xf32>
    %10 = math.absf %9 : vector<16x128xf32>
    %11 = arith.subf %8, %10 : vector<16x128xf32>
    %12 = math.absf %11 : vector<16x128xf32>
    %c16_i32 = arith.constant 16 : i32
    %13 = tpu.dynamic_rotate %3 by %c16_i32 dim 1 : vector<16x128xf32>, i32 -> vector<16x128xf32>
    %c16_i32_5 = arith.constant 16 : i32
    %14 = tpu.dynamic_rotate %4 by %c16_i32_5 dim 1 : vector<16x128xf32>, i32 -> vector<16x128xf32>
    %c1_i32_6 = arith.constant 1 : i32
    %15 = tpu.dynamic_rotate %13 by %c1_i32_6 dim 0 : vector<16x128xf32>, i32 -> vector<16x128xf32>
    %c1_i32_7 = arith.constant 1 : i32
    %16 = tpu.dynamic_rotate %14 by %c1_i32_7 dim 0 : vector<16x128xf32>, i32 -> vector<16x128xf32>
    %c0_8 = arith.constant 0 : index
    %c0_9 = arith.constant 0 : index
    %17 = vector.load %arg3[%c0_8, %c0_9] : memref<1x128xf32, #tpu.memory_space<vmem>>, vector<1x128xf32>
    %18 = vector.shape_cast %17 : vector<1x128xf32> to vector<1x128xf32>
    %19 = vector.broadcast %18 : vector<1x128xf32> to vector<16x128xf32>
    %cst = arith.constant 0.000000e+00 : f32
    %20 = vector.broadcast %cst : f32 to vector<16x128xf32>
    %21 = arith.cmpf oeq, %19, %20 : vector<16x128xf32>
    %22 = arith.select %21, %15, %13 : vector<16x128xi1>, vector<16x128xf32>
    %23 = arith.select %21, %16, %14 : vector<16x128xi1>, vector<16x128xf32>
    %24 = arith.subf %3, %22 : vector<16x128xf32>
    %25 = math.absf %24 : vector<16x128xf32>
    %26 = arith.subf %4, %23 : vector<16x128xf32>
    %27 = math.absf %26 : vector<16x128xf32>
    %28 = arith.subf %25, %27 : vector<16x128xf32>
    %29 = math.absf %28 : vector<16x128xf32>
    %c0_10 = arith.constant 0 : index
    %c0_11 = arith.constant 0 : index
    %30 = vector.load %arg4[%c0_10, %c0_11] : memref<16x1xf32, #tpu.memory_space<vmem>>, vector<16x1xf32>
    %c0_12 = arith.constant 0 : index
    %c0_13 = arith.constant 0 : index
    %31 = vector.load %arg3[%c0_12, %c0_13] : memref<1x128xf32, #tpu.memory_space<vmem>>, vector<1x128xf32>
    %32 = vector.broadcast %30 : vector<16x1xf32> to vector<16x128xf32>
    %33 = vector.broadcast %31 : vector<1x128xf32> to vector<16x128xf32>
    %34 = arith.maximumf %32, %33 : vector<16x128xf32>
    %c0_14 = arith.constant 0 : index
    %c0_15 = arith.constant 0 : index
    %35 = vector.load %arg2[%c0_14, %c0_15] : memref<1x128xf32, #tpu.memory_space<vmem>>, vector<1x128xf32>
    %36 = vector.broadcast %35 : vector<1x128xf32> to vector<16x128xf32>
    %37 = arith.mulf %12, %36 : vector<16x128xf32>
    %38 = arith.mulf %29, %34 : vector<16x128xf32>
    %39 = arith.addf %37, %38 : vector<16x128xf32>
    %40 = vector.shape_cast %39 : vector<16x128xf32> to vector<2x8x128xf32>
    %cst_16 = arith.constant dense<0.000000e+00> : vector<8x128xf32>
    %41 = vector.multi_reduction <add>, %40, %cst_16 [0] : vector<2x8x128xf32> to vector<8x128xf32>
    %c0_17 = arith.constant 0 : index
    %c0_18 = arith.constant 0 : index
    %42 = vector.load %arg7[%c0_17, %c0_18] : memref<8x128xf32, #tpu.memory_space<vmem>>, vector<8x128xf32>
    %43 = arith.addf %42, %41 : vector<8x128xf32>
    %c0_19 = arith.constant 0 : index
    %c0_20 = arith.constant 0 : index
    %44 = vector.load %arg7[%c0_19, %c0_20] : memref<8x128xf32, #tpu.memory_space<vmem>>, vector<8x128xf32>
    tpu.vector_store %arg7[%c0_19, %c0_20], %43 {strides = array<i32>} : memref<8x128xf32, #tpu.memory_space<vmem>>, vector<8x128xf32>,
    return
  }
  func.func @transform_0(%arg0: i32, %arg1: i32) -> (i32, i32) {
    %c0_i32 = arith.constant 0 : i32
    %c0_i32_0 = arith.constant 0 : i32
    %c0_i32_1 = arith.constant 0 : i32
    return %c0_i32, %c0_i32_0 : i32, i32
  }
  func.func @transform_1(%arg0: i32, %arg1: i32) -> (i32, i32) {
    %c0_i32 = arith.constant 0 : i32
    %c0_i32_0 = arith.constant 0 : i32
    %c0_i32_1 = arith.constant 0 : i32
    return %c0_i32, %c0_i32_0 : i32, i32
  }
  func.func @transform_2(%arg0: i32, %arg1: i32) -> (i32, i32) {
    %c0_i32 = arith.constant 0 : i32
    %c0_i32_0 = arith.constant 0 : i32
    %c0_i32_1 = arith.constant 0 : i32
    return %c0_i32, %c0_i32_0 : i32, i32
  }
  func.func @transform_3(%arg0: i32, %arg1: i32) -> (i32, i32) {
    %c1_i32 = arith.constant 1 : i32
    %0 = arith.muli %arg0, %c1_i32 : i32
    %1 = arith.addi %0, %arg1 : i32
    %c0_i32 = arith.constant 0 : i32
    %c0_i32_0 = arith.constant 0 : i32
    return %1, %c0_i32 : i32, i32
  }
  func.func @transform_4(%arg0: i32, %arg1: i32) -> (i32, i32) {
    %c1_i32 = arith.constant 1 : i32
    %0 = arith.muli %arg0, %c1_i32 : i32
    %1 = arith.addi %0, %arg1 : i32
    %c0_i32 = arith.constant 0 : i32
    %c0_i32_0 = arith.constant 0 : i32
    return %1, %c0_i32 : i32, i32
  }
  func.func @transform_5(%arg0: i32, %arg1: i32) -> (i32, i32) {
    %c0_i32 = arith.constant 0 : i32
    %c0_i32_0 = arith.constant 0 : i32
    return %arg0, %c0_i32 : i32, i32
  }
}

</mosaic_0001>

<llo_original>
// kernel: tpu_custom_call.1
$region0: #{tpu_custom_call.1}
  #allocation0 [shape = 'u32[]', space=smem, size = 0x4, offset = 0x4, fixed_abs, tag = 'smem constant byte address 0x4 - core index']
  #allocation1 [shape = 'u32[144,128]{1,0:T(1,128)}', space=vmem, size = 0x12000, scoped, tag = 'internal scratch']
  %s0 = inlined_call_operand.hbm [shape: f32[1,128], index: 0, kind: input, shape index: {}]
  %s1 = inlined_call_operand.hbm [shape: f32[1,128], index: 1, kind: input, shape index: {}]
  %s2 = inlined_call_operand.vmem [shape: f32[16,1], index: 2, kind: input, shape index: {}]
  %s3 = inlined_call_operand.vmem [shape: f32[16,128], index: 3, kind: input, shape index: {}]
  %s4 = inlined_call_operand.vmem [shape: f32[16,128], index: 4, kind: input, shape index: {}]
  %s5 = inlined_call_operand.hbm [shape: f32[8,128], index: 5, kind: output, shape index: {}]
  %s6 = sld [smem:[#allocation0]]
  $region42: #{tpu_custom_call.1} parent=0
    _
  %s8 = ssub.s32 1, %s6
  %s9 = scalar_select 0, %s8, %s6
  $region1: #{tpu_custom_call.1} parent=0
    #allocation2 [shape = 'u8[512]{0}', space=vmem, size = 0x400, scoped, tag = 'input window, operand 0, single buffered']
    #allocation3 [shape = 's32[1]{0}', space=sflag, size = 0x4, scoped, tag = 'scoped memory for tpu_custom_call.1']
    #allocation4 [shape = 's32[1]{0}', space=sflag, size = 0x4, scoped, tag = 'scoped memory for tpu_custom_call.1']
    #allocation5 [shape = 'u8[512]{0}', space=vmem, size = 0x400, scoped, tag = 'input window, operand 1, single buffered']
    #allocation6 [shape = 's32[1]{0}', space=sflag, size = 0x4, scoped, tag = 'scoped memory for tpu_custom_call.1']
    #allocation7 [shape = 'u8[4096]{0}', space=vmem, size = 0x1000, scoped, tag = 'output window, operand 0, single buffered']
    %10 = vsyncpa [#allocation3], 0
    %11 = vsyncpa [#allocation6], 0
    %12 = vsyncpa [#allocation4], 0
    // Predicated region
    $region2: #{tpu_custom_call.1} parent=1 // pred_check
      _
    $region3: #{tpu_custom_call.1} parent=1 // pred_check_branch
      %14 = sbr.rel (0) target = $region5
    $region4: #{tpu_custom_call.1} parent=1 // pred_region
      %s16 = ssub.s32 16, 16
      %17 = vsyncadd [#allocation3], %s16
      %s19 = sshll.u32 [#allocation2], 4
      %s20 = int_to_ptr.vmem [resolvable:$true] %s19
      %22 = dma.hbm_to_vmem [thread:$0]  %s0, 16, %s20, [#allocation3]
    $region5: #{tpu_custom_call.1} parent=1 // pred_fallthru
      _
    // Predicated region
    $region6: #{tpu_custom_call.1} parent=1 // pred_check
      _
    $region7: #{tpu_custom_call.1} parent=1 // pred_check_branch
      %24 = sbr.rel (0) target = $region9
    $region8: #{tpu_custom_call.1} parent=1 // pred_region
      %s26 = ssub.s32 16, 16
      %27 = vsyncadd [#allocation6], %s26
      %s29 = sshll.u32 [#allocation5], 4
      %s30 = int_to_ptr.vmem [resolvable:$true] %s29
      %32 = dma.hbm_to_vmem [thread:$0]  %s1, 16, %s30, [#allocation6]
    $region9: #{tpu_custom_call.1} parent=1 // pred_fallthru
      _
    // Predicated region
    $region10: #{tpu_custom_call.1} parent=1 // pred_check
      _
    $region11: #{tpu_custom_call.1} parent=1 // pred_check_branch
      %34 = sbr.rel (0) target = $region13
    $region12: #{tpu_custom_call.1} parent=1 // pred_region
      _
    $region13: #{tpu_custom_call.1} parent=1 // pred_fallthru
      _
    // Predicated region
    $region14: #{tpu_custom_call.1} parent=1 // pred_check
      _
    $region15: #{tpu_custom_call.1} parent=1 // pred_check_branch
      %36 = sbr.rel (0) target = $region17
    $region16: #{tpu_custom_call.1} parent=1 // pred_region
      %s37 = sadd.s32 0, 0
      %s38 = smul.u32 2, %s37
      %p39 = scmp.lt.s32.totalorder %s38, 1
      %s40 = scalar_select %p39, %s38, 1
      %s41 = smul.addr %s40, 8
      %s42 = scalar_lea.vmem %s3, %s41
      %s43 = sadd.s32 0, 0
      %s44 = smul.u32 2, %s43
    $region17: #{tpu_custom_call.1} parent=1 // pred_fallthru
      _
    // Predicated region
    $region18: #{tpu_custom_call.1} parent=1 // pred_check
      _
    $region19: #{tpu_custom_call.1} parent=1 // pred_check_branch
      %46 = sbr.rel (0) target = $region21
    $region20: #{tpu_custom_call.1} parent=1 // pred_region
      %s47 = sadd.s32 0, 0
      %s48 = smul.u32 2, %s47
      %p49 = scmp.lt.s32.totalorder %s48, 1
      %s50 = scalar_select %p49, %s48, 1
      %s51 = smul.addr %s50, 8
      %s52 = scalar_lea.vmem %s4, %s51
      %s53 = sadd.s32 0, 0
      %s54 = smul.u32 2, %s53
    $region21: #{tpu_custom_call.1} parent=1 // pred_fallthru
      _
    // Predicated region
    $region22: #{tpu_custom_call.1} parent=1 // pred_check
      _
    $region23: #{tpu_custom_call.1} parent=1 // pred_check_branch
      %56 = sbr.rel (0) target = $region25
    $region24: #{tpu_custom_call.1} parent=1 // pred_region
      %57 = dma.done [#allocation3], 16
    $region25: #{tpu_custom_call.1} parent=1 // pred_fallthru
      _
    // Predicated region
    $region26: #{tpu_custom_call.1} parent=1 // pred_check
      _
    $region27: #{tpu_custom_call.1} parent=1 // pred_check_branch
      %59 = sbr.rel (0) target = $region29
    $region28: #{tpu_custom_call.1} parent=1 // pred_region
      %60 = dma.done [#allocation6], 16
    $region29: #{tpu_custom_call.1} parent=1 // pred_fallthru
      _
    %s61 = sadd.s32 0, 0
    %s62 = smul.u32 2, %s61
    %p63 = scmp.lt.s32.totalorder %s62, 1
    %s64 = scalar_select %p63, %s62, 1
    %s65 = smul.addr %s64, 8
    %s66 = scalar_lea.vmem %s3, %s65
    %s67 = sadd.s32 0, 0
    %s68 = smul.u32 2, %s67
    %p69 = scmp.lt.s32.totalorder %s68, 1
    %s70 = scalar_select %p69, %s68, 1
    %s71 = smul.addr %s70, 8
    %s72 = scalar_lea.vmem %s4, %s71
    %s73 = sadd.s32 0, 0
    %s74 = smul.u32 2, %s73
    %p75 = scmp.lt.s32.totalorder %s74, 1
    %s76 = scalar_select %p75, %s74, 1
    %s77 = smul.addr %s76, 8
    %s78 = scalar_lea.vmem %s3, %s77
    %s79 = sadd.s32 0, 0
    %s80 = smul.u32 2, %s79
    %s81 = sadd.s32 0, 0
    %s82 = smul.u32 2, %s81
    %p83 = scmp.lt.s32.totalorder %s82, 1
    %s84 = scalar_select %p83, %s82, 1
    %s85 = smul.addr %s84, 8
    %s86 = scalar_lea.vmem %s4, %s85
    %s87 = sadd.s32 0, 0
    %s88 = smul.u32 2, %s87
    %p89 = scmp.eq.s32.totalorder 0, 0
    // Predicated region
    $region30: #{tpu_custom_call.1} parent=1 // pred_check
      %p90 = pneg %p89
    $region31: #{tpu_custom_call.1} parent=1 // pred_check_branch
      %92 = sbr.rel (%p90) target = $region33
    $region32: #{tpu_custom_call.1} parent=1 // pred_region
      %93 = vst [vmem:[#allocation7] sm:$0xff] 0.0
    $region33: #{tpu_custom_call.1} parent=1 // pred_fallthru
      _
    %v94 = vld [vmem:[%s78] sm:$0xff]
    %v95 = vld [vmem:[%s78 + $0x8] sm:$0xff]
    %v96 = vld [vmem:[%s86] sm:$0xff]
    %v97 = vld [vmem:[%s86 + $0x8] sm:$0xff]
    %98 = vrot.lane.b32.xlu0 %v94, 1
    %v99 = vpop.permute.xlu0 %98
    %100 = vrot.lane.b32.xlu0 %v95, 1
    %v101 = vpop.permute.xlu0 %100
    %102 = vrot.lane.b32.xlu0 %v96, 1
    %v103 = vpop.permute.xlu0 %102
    %104 = vrot.lane.b32.xlu0 %v97, 1
    %v105 = vpop.permute.xlu0 %104
    %v106 = vsub.f32 %v94, %v99
    %v107 = vsub.f32 %v95, %v101
    %v108 = vand.u32 2147483647, %v106
    %v109 = vand.u32 2147483647, %v107
    %v110 = vsub.f32 %v96, %v103
    %v111 = vsub.f32 %v97, %v105
    %v112 = vand.u32 2147483647, %v110
    %v113 = vand.u32 2147483647, %v111
    %v114 = vsub.f32 %v108, %v112
    %v115 = vsub.f32 %v109, %v113
    %v116 = vand.u32 2147483647, %v114
    %v117 = vand.u32 2147483647, %v115
    %118 = vrot.lane.b32.xlu0 %v94, 16
    %v119 = vpop.permute.xlu0 %118
    %120 = vrot.lane.b32.xlu0 %v95, 16
    %v121 = vpop.permute.xlu0 %120
    %122 = vrot.lane.b32.xlu0 %v96, 16
    %v123 = vpop.permute.xlu0 %122
    %124 = vrot.lane.b32.xlu0 %v97, 16
    %v125 = vpop.permute.xlu0 %124
    %v126 = vrot.slane %v119, 7
    %v127 = vrot.slane %v121, 7
    %v128 = vlaneseq
    %v129 = vshrl.u32 %v128, 7
    %vm130 = vcmp.lt.s32.totalorder %v129, 1
    %v131 = vsel %vm130, %v126, %v127
    %v132 = vsel %vm130, %v127, %v126
    %v133 = vrot.slane %v123, 7
    %v134 = vrot.slane %v125, 7
    %v135 = vsel %vm130, %v133, %v134
    %v136 = vsel %vm130, %v134, %v133
    %v137 = vld [vmem:[#allocation5] sm:$0x1]
    %v139 = vlaneseq
    %v140 = vshrl.u32 %v139, 7
    %v141 = vsub.s32 0, %v140
    %v142 = vrot.slane %v137, %v141
    %vm144 = vcmp.eq.f32.partialorder %v142, 0.0
    %v145 = vsel %vm144, %v132, %v119
    %v146 = vsel %vm144, %v131, %v121
    %v147 = vsel %vm144, %v136, %v123
    %v148 = vsel %vm144, %v135, %v125
    %v149 = vsub.f32 %v94, %v145
    %v150 = vsub.f32 %v95, %v146
    %v151 = vand.u32 2147483647, %v149
    %v152 = vand.u32 2147483647, %v150
    %v153 = vsub.f32 %v96, %v147
    %v154 = vsub.f32 %v97, %v148
    %v155 = vand.u32 2147483647, %v153
    %v156 = vand.u32 2147483647, %v154
    %v157 = vsub.f32 %v151, %v155
    %v158 = vsub.f32 %v152, %v156
    %v159 = vand.u32 2147483647, %v157
    %v160 = vand.u32 2147483647, %v158
    %v161 = vld [vmem:[%s2] sm:$0xff]
    %v162 = vld [vmem:[%s2 + $0x8] sm:$0xff]
    %164 = vset.pattern.permute.xlu0 0
    %165 = vperm.xlu0 %164, %v161
    %v166 = vpop.permute.xlu0 %165
    %169 = vset.pattern.permute.xlu0 0
    %170 = vperm.xlu0 %169, %v162
    %v171 = vpop.permute.xlu0 %170
    %v173 = vmax.f32 %v166, %v142
    %v174 = vmax.f32 %v171, %v142
    %v175 = vld [vmem:[#allocation2] sm:$0x1]
    %v177 = vlaneseq
    %v178 = vshrl.u32 %v177, 7
    %v179 = vsub.s32 0, %v178
    %v180 = vrot.slane %v175, %v179
    %v182 = vmul.f32 %v116, %v180
    %v183 = vmul.f32 %v117, %v180
    %v184 = vmul.f32 %v159, %v173
    %v185 = vmul.f32 %v160, %v174
    %v186 = vadd.f32 %v182, %v184
    %v187 = vadd.f32 %v183, %v185
    %v188 = vadd.f32 %v186, %v187
    %v189 = vld [vmem:[#allocation7] sm:$0xff]
    %v190 = vadd.f32 %v189, %v188
    %191 = vst [vmem:[#allocation7] sm:$0xff] %v190
    // Predicated region
    $region34: #{tpu_custom_call.1} parent=1 // pred_check
      _
    $region35: #{tpu_custom_call.1} parent=1 // pred_check_branch
      %193 = sbr.rel (0) target = $region37
    $region36: #{tpu_custom_call.1} parent=1 // pred_region
      %s195 = ssub.s32 128, 128
      %196 = vsyncadd [#allocation4], %s195
      %s198 = sshll.u32 [#allocation7], 4
      %s199 = int_to_ptr.vmem [resolvable:$true] %s198
      %201 = dma.vmem_to_hbm [thread:$0]  %s199, 128, %s5, [#allocation4]
    $region37: #{tpu_custom_call.1} parent=1 // pred_fallthru
      _
    // Predicated region
    $region38: #{tpu_custom_call.1} parent=1 // pred_check
      _
    $region39: #{tpu_custom_call.1} parent=1 // pred_check_branch
      %203 = sbr.rel (0) target = $region41
    $region40: #{tpu_custom_call.1} parent=1 // pred_region
      %204 = dma.done [#allocation4], 128
    $region41: #{tpu_custom_call.1} parent=1 // pred_fallthru
      _
    %205 = vsyncpa [#allocation3], 1
    %206 = vsyncpa [#allocation6], 1
    %207 = vsyncpa [#allocation4], 1

</llo_original>
